<compile_context>
chip_gen: v6e
topology: v6e:2x2x1
jax: 0.10.0
libtpu: 0.0.40
codegen_flags: <defaults>
</compile_context>

<pallas_src>
import numpy as np
import jax
import jax.numpy as jnp
from jax.experimental import pallas as pl
from jax.experimental.pallas import tpu as pltpu


# ----------------------------------------------------------------------------
# Constant matrices (shape-dependent only, deterministic)
# ----------------------------------------------------------------------------
def adaptive_avg_pool_matrix(H, W, p):
    """P[(i*p+j), (h*W+w)] = 1/count if (h,w) in adaptive bin (i,j). Matches
    torch.nn.AdaptiveAvgPool2d bin boundaries (floor/ceil)."""
    M = np.zeros((p * p, H * W), np.float32)
    for i in range(p):
        h0 = (i * H) // p
        h1 = -(-((i + 1) * H) // p)
        for j in range(p):
            w0 = (j * W) // p
            w1 = -(-((j + 1) * W) // p)
            cnt = float((h1 - h0) * (w1 - w0))
            for hh in range(h0, h1):
                for ww in range(w0, w1):
                    M[i * p + j, hh * W + ww] = 1.0 / cnt
    return M


def bilinear_up_matrix(H, W, p):
    """U[(oh*W+ow), (i*p+j)] : bilinear interpolation weights, align_corners=True."""
    def axis_mat(out_size, in_size):
        A = np.zeros((out_size, in_size), np.float32)
        if in_size == 1:
            A[:, 0] = 1.0
            return A
        for o in range(out_size):
            src = 0.0 if out_size == 1 else o * (in_size - 1) / (out_size - 1)
            i0 = int(np.floor(src))
            i1 = min(i0 + 1, in_size - 1)
            f = src - i0
            A[o, i0] += 1.0 - f
            A[o, i1] += f
        return A

    Ah = axis_mat(H, p)
    Aw = axis_mat(W, p)
    return np.einsum("hi,wj->hwij", Ah, Aw).reshape(H * W, p * p).astype(np.float32)


# ----------------------------------------------------------------------------
# Pallas kernels
# ----------------------------------------------------------------------------
def _stages_kernel(x_ref, pall_ref, wcat_ref, scale_ref, bias_ref, mask_ref,
                   uall_ref, o_ref):
    # x_ref:    (1, HW, C)  bf16     pall_ref: (SPP, HW) bf16
    # wcat_ref: (C, C)      bf16     scale/bias: (1, C)  f32
    # mask_ref: (SPP, C)    f32      uall_ref: (HW, SPP) bf16
    # o_ref:    (1, HW, C)  bf16     (already-concatenated stage outputs)
    x = x_ref[0]                                                          # (HW, C)
    pooled = jnp.dot(pall_ref[...], x,
                     preferred_element_type=jnp.float32)                  # (SPP, C) f32
    z = jnp.dot(pooled.astype(jnp.bfloat16), wcat_ref[...],
                preferred_element_type=jnp.float32)                       # (SPP, C) f32
    # BN + ReLU in f32, then block-diagonal mask keeps each stage's rows only in
    # its own column block so the single upsample matmul below yields the concat.
    y = jnp.maximum(z * scale_ref[...] + bias_ref[...], 0.0) * mask_ref[...]
    up = jnp.dot(uall_ref[...], y.astype(jnp.bfloat16),
                 preferred_element_type=jnp.float32)                      # (HW, C) f32
    o_ref[0] = up.astype(o_ref.dtype)


def _bottleneck_kernel(x_ref, s_ref, wx_ref, ws_ref, scale_ref, bias_ref,
                       o_ref, padx_ref, pads_ref, acc_ref):
    # x_ref/s_ref: (1, H, W, C) bf16     wx/ws: (3, 3, C, Coutp) bf16
    # scale/bias:  (1, Coutp)   f32      o_ref: (1, HW, Coutp)   f32
    # padx/pads:   VMEM (H+2, W+2, C) bf16   acc: VMEM (HW, Coutp) f32
    _, H, W, C = x_ref.shape
    HW = H * W
    # Assemble zero-padded halos of the two concat halves inside VMEM — no HBM
    # concat or pad passes.
    padx_ref[...] = jnp.zeros_like(padx_ref)
    pads_ref[...] = jnp.zeros_like(pads_ref)
    padx_ref[1:H + 1, 1:W + 1, :] = x_ref[0]
    pads_ref[1:H + 1, 1:W + 1, :] = s_ref[0]
    acc_ref[...] = jnp.zeros_like(acc_ref)
    for dh in range(3):
        for dw in range(3):
            px = padx_ref[dh:dh + H, dw:dw + W, :].reshape(HW, C)
            ps = pads_ref[dh:dh + H, dw:dw + W, :].reshape(HW, C)
            acc_ref[...] += (
                jnp.dot(px, wx_ref[dh, dw], preferred_element_type=jnp.float32)
                + jnp.dot(ps, ws_ref[dh, dw], preferred_element_type=jnp.float32))
    # BN + ReLU in f32; padded output channels carry scale=bias=0 -> stay 0.
    o_ref[0] = jnp.maximum(acc_ref[...] * scale_ref[...] + bias_ref[...], 0.0)
    # Dropout2d(0.1) is identity in eval mode (see TODO at top).


def run_stages(x_flat, P_all, W_cat, scale_cat, bias_cat, mask, U_all):
    N, HW, C = x_flat.shape
    SPP = P_all.shape[0]
    return pl.pallas_call(
        _stages_kernel,
        out_shape=jax.ShapeDtypeStruct((N, HW, C), jnp.bfloat16),
        grid=(N,),
        in_specs=[
            pl.BlockSpec((1, HW, C), lambda n: (n, 0, 0)),
            pl.BlockSpec((SPP, HW), lambda n: (0, 0)),
            pl.BlockSpec((C, C), lambda n: (0, 0)),
            pl.BlockSpec((1, C), lambda n: (0, 0)),
            pl.BlockSpec((1, C), lambda n: (0, 0)),
            pl.BlockSpec((SPP, C), lambda n: (0, 0)),
            pl.BlockSpec((HW, SPP), lambda n: (0, 0)),
        ],
        out_specs=pl.BlockSpec((1, HW, C), lambda n: (n, 0, 0)),
        compiler_params=pltpu.CompilerParams(
            dimension_semantics=("parallel",),
            vmem_limit_bytes=32 * 1024 * 1024),
    )(x_flat, P_all, W_cat, scale_cat, bias_cat, mask, U_all)


def run_bottleneck(x_nhwc, slab_nhwc, w3_x, w3_s, scale, bias):
    N, H, W, C = x_nhwc.shape
    Coutp = w3_x.shape[-1]
    return pl.pallas_call(
        _bottleneck_kernel,
        out_shape=jax.ShapeDtypeStruct((N, H * W, Coutp), jnp.float32),
        grid=(N,),
        in_specs=[
            pl.BlockSpec((1, H, W, C), lambda n: (n, 0, 0, 0)),
            pl.BlockSpec((1, H, W, C), lambda n: (n, 0, 0, 0)),
            pl.BlockSpec((3, 3, C, Coutp), lambda n: (0, 0, 0, 0)),
            pl.BlockSpec((3, 3, C, Coutp), lambda n: (0, 0, 0, 0)),
            pl.BlockSpec((1, Coutp), lambda n: (0, 0)),
            pl.BlockSpec((1, Coutp), lambda n: (0, 0)),
        ],
        out_specs=pl.BlockSpec((1, H * W, Coutp), lambda n: (n, 0, 0)),
        scratch_shapes=[
            pltpu.VMEM((H + 2, W + 2, C), jnp.bfloat16),
            pltpu.VMEM((H + 2, W + 2, C), jnp.bfloat16),
            pltpu.VMEM((H * W, Coutp), jnp.float32),
        ],
        compiler_params=pltpu.CompilerParams(
            dimension_semantics=("parallel",),
            vmem_limit_bytes=32 * 1024 * 1024),
    )(x_nhwc, slab_nhwc, w3_x, w3_s, scale, bias)


# ----------------------------------------------------------------------------
# Parameters & one-time preparation (hoisted out of the forward hot path)
# ----------------------------------------------------------------------------
def fold_bn(gamma, beta, mean, var, eps=1e-5):
    scale = gamma / jnp.sqrt(var + eps)
    bias = beta - mean * scale
    return scale.reshape(1, -1), bias.reshape(1, -1)


def init_psp_params(key, in_channels, pool_sizes):
    oc = in_channels // len(pool_sizes)
    cin_b = in_channels + oc * len(pool_sizes)
    params = {"stages": []}
    keys = jax.random.split(key, 5 * len(pool_sizes) + 5)
    k = 0
    for _ in pool_sizes:
        w1 = 0.1 * jax.random.normal(keys[k], (in_channels, oc), jnp.float32); k += 1
        gamma = 1.0 + 0.1 * jax.random.normal(keys[k], (oc,), jnp.float32); k += 1
        beta = 0.1 * jax.random.normal(keys[k], (oc,), jnp.float32); k += 1
        mean = 0.05 * jax.random.normal(keys[k], (oc,), jnp.float32); k += 1
        var = jax.random.uniform(keys[k], (oc,), jnp.float32, 0.5, 1.5); k += 1
        scale, bias = fold_bn(gamma, beta, mean, var)
        params["stages"].append((w1, scale, bias))
    w3 = 0.05 * jax.random.normal(keys[k], (3, 3, cin_b, oc), jnp.float32); k += 1
    gamma = 1.0 + 0.1 * jax.random.normal(keys[k], (oc,), jnp.float32); k += 1
    beta = 0.1 * jax.random.normal(keys[k], (oc,), jnp.float32); k += 1
    mean = 0.05 * jax.random.normal(keys[k], (oc,), jnp.float32); k += 1
    var = jax.random.uniform(keys[k], (oc,), jnp.float32, 0.5, 1.5); k += 1
    b_scale, b_bias = fold_bn(gamma, beta, mean, var)
    params["w3"] = w3
    params["b_scale"] = b_scale
    params["b_bias"] = b_bias
    return params


def prepare_psp(params, H, W, C, pool_sizes):
    """Build the fused, bf16-cast constants once per (H, W, C, pool_sizes)."""
    S = len(pool_sizes)
    OC = C // S
    HW = H * W
    SPP = sum(p * p for p in pool_sizes)

    P_all = np.zeros((SPP, HW), np.float32)
    U_all = np.zeros((HW, SPP), np.float32)
    mask = np.zeros((SPP, S * OC), np.float32)
    r = 0
    for s, p in enumerate(pool_sizes):
        P_all[r:r + p * p, :] = adaptive_avg_pool_matrix(H, W, p)
        U_all[:, r:r + p * p] = bilinear_up_matrix(H, W, p)
        mask[r:r + p * p, s * OC:(s + 1) * OC] = 1.0
        r += p * p

    W_cat = jnp.concatenate([w for (w, _, _) in params["stages"]], axis=1)     # (C, C)
    scale_cat = jnp.concatenate([sc for (_, sc, _) in params["stages"]], axis=1)
    bias_cat = jnp.concatenate([b for (_, _, b) in params["stages"]], axis=1)

    # Bottleneck: split w3 along Cin (x-half / stage-half) and zero-pad Cout to
    # a multiple of 128 for a lane-dense output store.
    w3 = params["w3"]                                   # (3, 3, 2C, Cout)
    Cout = w3.shape[-1]
    Coutp = ((Cout + 127) // 128) * 128
    pad_c = Coutp - Cout
    w3p = jnp.pad(w3, ((0, 0), (0, 0), (0, 0), (0, pad_c)))
    b_scale = jnp.pad(params["b_scale"], ((0, 0), (0, pad_c)))
    b_bias = jnp.pad(params["b_bias"], ((0, 0), (0, pad_c)))

    return dict(
        P_all=jnp.asarray(P_all, jnp.bfloat16),
        U_all=jnp.asarray(U_all, jnp.bfloat16),
        mask=jnp.asarray(mask, jnp.float32),
        W_cat=W_cat.astype(jnp.bfloat16),
        scale_cat=scale_cat.astype(jnp.float32),
        bias_cat=bias_cat.astype(jnp.float32),
        w3_x=w3p[:, :, :C, :].astype(jnp.bfloat16),
        w3_s=w3p[:, :, C:, :].astype(jnp.bfloat16),
        b_scale=b_scale.astype(jnp.float32),
        b_bias=b_bias.astype(jnp.float32),
        Cout=Cout,
    )


# ----------------------------------------------------------------------------
# Forward
# ----------------------------------------------------------------------------
def psp_forward(x_nchw, prep):
    N, C, H, W = x_nchw.shape
    x = jnp.transpose(x_nchw, (0, 2, 3, 1)).astype(jnp.bfloat16)      # (N, H, W, C)
    x_flat = x.reshape(N, H * W, C)
    slab = run_stages(x_flat, prep["P_all"], prep["W_cat"], prep["scale_cat"],
                      prep["bias_cat"], prep["mask"], prep["U_all"])   # (N, HW, C) bf16
    slab = slab.reshape(N, H, W, C)
    out = run_bottleneck(x, slab, prep["w3_x"], prep["w3_s"],
                         prep["b_scale"], prep["b_bias"])              # (N, HW, Coutp) f32
    Cout = prep["Cout"]
    out = out[:, :, :Cout].reshape(N, H, W, Cout)
    return jnp.transpose(out, (0, 3, 1, 2))                            # back to NCHW


# Pure-JAX f32 reference (PyTorch semantics, no Pallas) for the correctness check.
def psp_reference(x_nchw, params, pool_sizes):
    N, C, H, W = x_nchw.shape
    x = jnp.transpose(x_nchw, (0, 2, 3, 1)).astype(jnp.float32)
    x_flat = x.reshape(N, H * W, C)
    pyramids = [x]
    for p, (w1, scale, bias) in zip(pool_sizes, params["stages"]):
        P = jnp.asarray(adaptive_avg_pool_matrix(H, W, p))
        U = jnp.asarray(bilinear_up_matrix(H, W, p))
        pooled = jnp.einsum("ps,nsc->npc", P, x_flat)
        y = jnp.einsum("npc,co->npo", pooled, w1)
        y = jnp.maximum(y * scale + bias, 0.0)
        up = jnp.einsum("sp,npo->nso", U, y)
        pyramids.append(up.reshape(N, H, W, -1))
    cat = jnp.concatenate(pyramids, axis=-1)
    xp = jnp.pad(cat, ((0, 0), (1, 1), (1, 1), (0, 0)))
    Cout = params["w3"].shape[-1]
    acc = jnp.zeros((N, H * W, Cout), jnp.float32)
    for dh in range(3):
        for dw in range(3):
            patch = xp[:, dh:dh + H, dw:dw + W, :].reshape(N, H * W, -1)
            acc = acc + jnp.einsum("nsc,co->nso", patch, params["w3"][dh, dw])
    out = jnp.maximum(acc * params["b_scale"] + params["b_bias"], 0.0)
    return jnp.transpose(out.reshape(N, H, W, Cout), (0, 3, 1, 2))


if __name__ == "__main__":
    N, C, H, W = 2, 8, 12, 12
    pool_sizes = (1, 2, 3, 6)

    key = jax.random.PRNGKey(0)
    k_x, k_p = jax.random.split(key)
    x = jax.random.normal(k_x, (N, C, H, W), jnp.float32)
    params = init_psp_params(k_p, C, pool_sizes)
    prep = prepare_psp(params, H, W, C, pool_sizes)

    out = jax.block_until_ready(psp_forward(x, prep))
    ref = jax.block_until_ready(psp_reference(x, params, pool_sizes))

    assert out.shape == (N, C // len(pool_sizes), H, W), out.shape
    # bf16 matmul operands (f32 accumulation) vs f32 reference -> loose tolerance.
    np.testing.assert_allclose(np.asarray(out), np.asarray(ref), rtol=3e-2, atol=3e-2)

    print("KERNEL_OK")
</pallas_src>

<mosaic_0001>
module attributes {stable_mosaic.version = 11 : i64} {
  func.func @_stages_kernel(%arg0: i32, %arg1: memref<1x144x8xbf16, #tpu.memory_space<vmem>>, %arg2: memref<50x144xbf16, #tpu.memory_space<vmem>>, %arg3: memref<8x8xbf16, #tpu.memory_space<vmem>>, %arg4: memref<1x8xf32, #tpu.memory_space<vmem>>, %arg5: memref<1x8xf32, #tpu.memory_space<vmem>>, %arg6: memref<50x8xf32, #tpu.memory_space<vmem>>, %arg7: memref<144x50xbf16, #tpu.memory_space<vmem>>, %arg8: memref<1x144x8xbf16, #tpu.memory_space<vmem>>) attributes {dimension_semantics = [#tpu.dimension_semantics<parallel>], iteration_bounds = array<i64: 2>, scalar_prefetch = 0 : i64, scratch_operands = 0 : i64, tpu.core_type = #tpu.core_type<tc>, window_params = [{transform_indices = @transform_0, window_bounds = array<i64: 1, 144, 8>}, {pipeline_mode = #tpu.pipeline_mode<synchronous>, transform_indices = @transform_1, window_bounds = array<i64: 50, 144>}, {pipeline_mode = #tpu.pipeline_mode<synchronous>, transform_indices = @transform_2, window_bounds = array<i64: 8, 8>}, {pipeline_mode = #tpu.pipeline_mode<synchronous>, transform_indices = @transform_3, window_bounds = array<i64: 1, 8>}, {pipeline_mode = #tpu.pipeline_mode<synchronous>, transform_indices = @transform_4, window_bounds = array<i64: 1, 8>}, {pipeline_mode = #tpu.pipeline_mode<synchronous>, transform_indices = @transform_5, window_bounds = array<i64: 50, 8>}, {pipeline_mode = #tpu.pipeline_mode<synchronous>, transform_indices = @transform_6, window_bounds = array<i64: 144, 50>}, {transform_indices = @transform_7, window_bounds = array<i64: 1, 144, 8>}]} {
    %c0 = arith.constant 0 : index
    %c0_0 = arith.constant 0 : index
    %c0_1 = arith.constant 0 : index
    %0 = vector.load %arg1[%c0, %c0_0, %c0_1] : memref<1x144x8xbf16, #tpu.memory_space<vmem>>, vector<1x144x8xbf16>
    %1 = vector.shape_cast %0 : vector<1x144x8xbf16> to vector<144x8xbf16>
    %c0_2 = arith.constant 0 : index
    %c0_3 = arith.constant 0 : index
    %2 = vector.load %arg2[%c0_2, %c0_3] : memref<50x144xbf16, #tpu.memory_space<vmem>>, vector<50x144xbf16>
    %cst = arith.constant dense<0.000000e+00> : vector<50x8xf32>
    %3 = tpu.matmul %2, %1, %cst {dimension_numbers = #tpu.dot_dimension_numbers<[1], [0], [0], [1], [0, 0, 1, 1], [], []>} : vector<50x144xbf16>, vector<144x8xbf16>, vector<50x8xf32> -> vector<50x8xf32>
    %4 = arith.truncf %3 : vector<50x8xf32> to vector<50x8xbf16>
    %c0_4 = arith.constant 0 : index
    %c0_5 = arith.constant 0 : index
    %5 = vector.load %arg3[%c0_4, %c0_5] : memref<8x8xbf16, #tpu.memory_space<vmem>>, vector<8x8xbf16>
    %cst_6 = arith.constant dense<0.000000e+00> : vector<50x8xf32>
    %6 = tpu.matmul %4, %5, %cst_6 {dimension_numbers = #tpu.dot_dimension_numbers<[1], [0], [0], [1], [0, 0, 1, 1], [], []>} : vector<50x8xbf16>, vector<8x8xbf16>, vector<50x8xf32> -> vector<50x8xf32>
    %c0_7 = arith.constant 0 : index
    %c0_8 = arith.constant 0 : index
    %7 = vector.load %arg4[%c0_7, %c0_8] : memref<1x8xf32, #tpu.memory_space<vmem>>, vector<1x8xf32>
    %8 = vector.broadcast %7 : vector<1x8xf32> to vector<50x8xf32>
    %9 = arith.mulf %6, %8 : vector<50x8xf32>
    %c0_9 = arith.constant 0 : index
    %c0_10 = arith.constant 0 : index
    %10 = vector.load %arg5[%c0_9, %c0_10] : memref<1x8xf32, #tpu.memory_space<vmem>>, vector<1x8xf32>
    %11 = vector.broadcast %10 : vector<1x8xf32> to vector<50x8xf32>
    %12 = arith.addf %9, %11 : vector<50x8xf32>
    %cst_11 = arith.constant 0.000000e+00 : f32
    %13 = vector.broadcast %cst_11 : f32 to vector<50x8xf32>
    %14 = arith.maximumf %12, %13 : vector<50x8xf32>
    %c0_12 = arith.constant 0 : index
    %c0_13 = arith.constant 0 : index
    %15 = vector.load %arg6[%c0_12, %c0_13] : memref<50x8xf32, #tpu.memory_space<vmem>>, vector<50x8xf32>
    %16 = arith.mulf %14, %15 : vector<50x8xf32>
    %c0_14 = arith.constant 0 : index
    %c0_15 = arith.constant 0 : index
    %17 = vector.load %arg7[%c0_14, %c0_15] : memref<144x50xbf16, #tpu.memory_space<vmem>>, vector<144x50xbf16>
    %18 = arith.truncf %16 : vector<50x8xf32> to vector<50x8xbf16>
    %cst_16 = arith.constant dense<0.000000e+00> : vector<144x8xf32>
    %19 = tpu.matmul %17, %18, %cst_16 {dimension_numbers = #tpu.dot_dimension_numbers<[1], [0], [0], [1], [0, 0, 1, 1], [], []>} : vector<144x50xbf16>, vector<50x8xbf16>, vector<144x8xf32> -> vector<144x8xf32>
    %20 = arith.truncf %19 : vector<144x8xf32> to vector<144x8xbf16>
    %c0_17 = arith.constant 0 : index
    %c0_18 = arith.constant 0 : index
    %c0_19 = arith.constant 0 : index
    %21 = vector.load %arg8[%c0_17, %c0_18, %c0_19] : memref<1x144x8xbf16, #tpu.memory_space<vmem>>, vector<1x144x8xbf16>
    %22 = vector.shape_cast %21 : vector<1x144x8xbf16> to vector<144x8xbf16>
    %23 = vector.shape_cast %20 : vector<144x8xbf16> to vector<1x144x8xbf16>
    tpu.vector_store %arg8[%c0_17, %c0_18, %c0_19], %23 {strides = array<i32>} : memref<1x144x8xbf16, #tpu.memory_space<vmem>>, vector<1x144x8xbf16>,
    return
  }
  func.func @transform_0(%arg0: i32) -> (i32, i32, i32) {
    %c0_i32 = arith.constant 0 : i32
    %c0_i32_0 = arith.constant 0 : i32
    %c0_i32_1 = arith.constant 0 : i32
    return %arg0, %c0_i32, %c0_i32_0 : i32, i32, i32
  }
  func.func @transform_1(%arg0: i32) -> (i32, i32) {
    %c0_i32 = arith.constant 0 : i32
    %c0_i32_0 = arith.constant 0 : i32
    %c0_i32_1 = arith.constant 0 : i32
    return %c0_i32, %c0_i32_0 : i32, i32
  }
  func.func @transform_2(%arg0: i32) -> (i32, i32) {
    %c0_i32 = arith.constant 0 : i32
    %c0_i32_0 = arith.constant 0 : i32
    %c0_i32_1 = arith.constant 0 : i32
    return %c0_i32, %c0_i32_0 : i32, i32
  }
  func.func @transform_3(%arg0: i32) -> (i32, i32) {
    %c0_i32 = arith.constant 0 : i32
    %c0_i32_0 = arith.constant 0 : i32
    %c0_i32_1 = arith.constant 0 : i32
    return %c0_i32, %c0_i32_0 : i32, i32
  }
  func.func @transform_4(%arg0: i32) -> (i32, i32) {
    %c0_i32 = arith.constant 0 : i32
    %c0_i32_0 = arith.constant 0 : i32
    %c0_i32_1 = arith.constant 0 : i32
    return %c0_i32, %c0_i32_0 : i32, i32
  }
  func.func @transform_5(%arg0: i32) -> (i32, i32) {
    %c0_i32 = arith.constant 0 : i32
    %c0_i32_0 = arith.constant 0 : i32
    %c0_i32_1 = arith.constant 0 : i32
    return %c0_i32, %c0_i32_0 : i32, i32
  }
  func.func @transform_6(%arg0: i32) -> (i32, i32) {
    %c0_i32 = arith.constant 0 : i32
    %c0_i32_0 = arith.constant 0 : i32
    %c0_i32_1 = arith.constant 0 : i32
    return %c0_i32, %c0_i32_0 : i32, i32
  }
  func.func @transform_7(%arg0: i32) -> (i32, i32, i32) {
    %c0_i32 = arith.constant 0 : i32
    %c0_i32_0 = arith.constant 0 : i32
    %c0_i32_1 = arith.constant 0 : i32
    return %arg0, %c0_i32, %c0_i32_0 : i32, i32, i32
  }
}

</mosaic_0001>

<llo_original>
// kernel: tpu_custom_call.1
$region0: #{tpu_custom_call.1}
  #allocation0 [shape = 'u32[]', space=smem, size = 0x4, offset = 0x4, fixed_abs, tag = 'smem constant byte address 0x4 - core index']
  #allocation1 [shape = 'u32[144,128]{1,0:T(1,128)}', space=vmem, size = 0x12000, scoped, tag = 'internal scratch']
  %s0 = inlined_call_operand.vmem [shape: bf16[2,144,8], index: 0, kind: input, shape index: {}]
  %s1 = inlined_call_operand.vmem [shape: bf16[50,144], index: 1, kind: input, shape index: {}]
  %s2 = inlined_call_operand.vmem [shape: bf16[8,8], index: 2, kind: input, shape index: {}]
  %s3 = inlined_call_operand.vmem [shape: f32[1,8], index: 3, kind: input, shape index: {}]
  %s4 = inlined_call_operand.vmem [shape: f32[1,8], index: 4, kind: input, shape index: {}]
  %s5 = inlined_call_operand.vmem [shape: f32[50,8], index: 5, kind: input, shape index: {}]
  %s6 = inlined_call_operand.vmem [shape: bf16[144,50], index: 6, kind: input, shape index: {}]
  %s7 = inlined_call_operand.vmem [shape: bf16[2,144,8], index: 7, kind: output, shape index: {}]
  %s8 = sld [smem:[#allocation0]]
  $region61: #{tpu_custom_call.1} parent=0
    _
  %s10 = ssub.s32 1, %s8
  %s11 = scalar_select 0, %s10, %s8
  loop: start=0, step=1, limit=4
  $region2: #{tpu_custom_call.1} parent=0 // loop_pre_header
    _
  $region3: #{tpu_custom_call.1} parent=0 // loop_header
    %s13 = sphi 0, %s17
    %p14 = scmp.ge.s32.totalorder %s13, 4
    %s23 = sphi 0, %s25
    %s26 = sphi 0, %s23
    %s27 = sphi 0, %s26
    %s43 = sphi 0, %s27
    %s47 = sphi 0, %s47
    %s49 = sphi 0, %s47
    %s50 = sphi 0, %s49
    %s64 = sphi 0, %s50
    %s68 = sphi 0, %s68
    %s70 = sphi 0, %s68
    %s71 = sphi 0, %s70
    %s85 = sphi 0, %s71
    %s89 = sphi 0, %s89
    %s91 = sphi 0, %s89
    %s92 = sphi 0, %s91
    %s106 = sphi 0, %s92
    %s110 = sphi 0, %s110
    %s112 = sphi 0, %s110
    %s113 = sphi 0, %s112
    %s127 = sphi 0, %s113
    %s131 = sphi 0, %s131
    %s133 = sphi 0, %s131
    %s134 = sphi 0, %s133
    %s148 = sphi 0, %s134
    %s152 = sphi 0, %s152
    %s154 = sphi 0, %s152
    %s155 = sphi 0, %s154
    %s169 = sphi 0, %s155
    %s175 = sphi 0, %s177
    %s178 = sphi 0, %s175
    %s179 = sphi 0, %s178
    %s195 = sphi 0, %s179
  $region4: #{tpu_custom_call.1} parent=0 // loop_header_branch
    %16 = sbr.rel (%p14) target = $region8
  $region5: #{tpu_custom_call.1} parent=0 // loop_body
    %s18 = ssub.s32 %s13, 1
    %s19 = ssub.s32 %s13, 2
    %s20 = sadd.s32 %s13, 1
    %s21 = ssub.s32 %s13, %s20
    %p22 = scmp.eq.s32.totalorder %s21, 0
    %s24 = sadd.s32 %s23, 1
    %s25 = scalar_select %p22, %s23, %s24
    %p28 = pneg %p22
    %p29 = scmp.eq.s32.totalorder %s13, 1
    %p30 = por %p28, %p29
    %p31 = scmp.ne.s32.totalorder %s23, %s26
    %p32 = scmp.eq.s32.totalorder %s13, 0
    %p33 = por %p31, %p32
    %p34 = scmp.ne.s32.totalorder %s23, %s26
    %p35 = scmp.eq.s32.totalorder %s18, 1
    %p36 = por %p34, %p35
    %p37 = scmp.ne.s32.totalorder %s26, %s27
    %p38 = scmp.eq.s32.totalorder %s18, 0
    %p39 = por %p37, %p38
    %p40 = scmp.ne.s32.totalorder %s26, %s27
    %p41 = scmp.eq.s32.totalorder %s19, 1
    %p42 = por %p40, %p41
    %p44 = scmp.ne.s32.totalorder %s27, %s43
    %p45 = scmp.eq.s32.totalorder %s19, 0
    %p46 = por %p44, %p45
    %s48 = sadd.s32 %s47, 1
    %p51 = scmp.eq.s32.totalorder %s13, 1
    %p52 = scmp.ne.s32.totalorder %s47, %s49
    %p53 = scmp.eq.s32.totalorder %s13, 0
    %p54 = por %p52, %p53
    %p55 = scmp.ne.s32.totalorder %s47, %s49
    %p56 = scmp.eq.s32.totalorder %s18, 1
    %p57 = por %p55, %p56
    %p58 = scmp.ne.s32.totalorder %s49, %s50
    %p59 = scmp.eq.s32.totalorder %s18, 0
    %p60 = por %p58, %p59
    %p61 = scmp.ne.s32.totalorder %s49, %s50
    %p62 = scmp.eq.s32.totalorder %s19, 1
    %p63 = por %p61, %p62
    %p65 = scmp.ne.s32.totalorder %s50, %s64
    %p66 = scmp.eq.s32.totalorder %s19, 0
    %p67 = por %p65, %p66
    %s69 = sadd.s32 %s68, 1
    %p72 = scmp.eq.s32.totalorder %s13, 1
    %p73 = scmp.ne.s32.totalorder %s68, %s70
    %p74 = scmp.eq.s32.totalorder %s13, 0
    %p75 = por %p73, %p74
    %p76 = scmp.ne.s32.totalorder %s68, %s70
    %p77 = scmp.eq.s32.totalorder %s18, 1
    %p78 = por %p76, %p77
    %p79 = scmp.ne.s32.totalorder %s70, %s71
    %p80 = scmp.eq.s32.totalorder %s18, 0
    %p81 = por %p79, %p80
    %p82 = scmp.ne.s32.totalorder %s70, %s71
    %p83 = scmp.eq.s32.totalorder %s19, 1
    %p84 = por %p82, %p83
    %p86 = scmp.ne.s32.totalorder %s71, %s85
    %p87 = scmp.eq.s32.totalorder %s19, 0
    %p88 = por %p86, %p87
    %s90 = sadd.s32 %s89, 1
    %p93 = scmp.eq.s32.totalorder %s13, 1
    %p94 = scmp.ne.s32.totalorder %s89, %s91
    %p95 = scmp.eq.s32.totalorder %s13, 0
    %p96 = por %p94, %p95
    %p97 = scmp.ne.s32.totalorder %s89, %s91
    %p98 = scmp.eq.s32.totalorder %s18, 1
    %p99 = por %p97, %p98
    %p100 = scmp.ne.s32.totalorder %s91, %s92
    %p101 = scmp.eq.s32.totalorder %s18, 0
    %p102 = por %p100, %p101
    %p103 = scmp.ne.s32.totalorder %s91, %s92
    %p104 = scmp.eq.s32.totalorder %s19, 1
    %p105 = por %p103, %p104
    %p107 = scmp.ne.s32.totalorder %s92, %s106
    %p108 = scmp.eq.s32.totalorder %s19, 0
    %p109 = por %p107, %p108
    %s111 = sadd.s32 %s110, 1
    %p114 = scmp.eq.s32.totalorder %s13, 1
    %p115 = scmp.ne.s32.totalorder %s110, %s112
    %p116 = scmp.eq.s32.totalorder %s13, 0
    %p117 = por %p115, %p116
    %p118 = scmp.ne.s32.totalorder %s110, %s112
    %p119 = scmp.eq.s32.totalorder %s18, 1
    %p120 = por %p118, %p119
    %p121 = scmp.ne.s32.totalorder %s112, %s113
    %p122 = scmp.eq.s32.totalorder %s18, 0
    %p123 = por %p121, %p122
    %p124 = scmp.ne.s32.totalorder %s112, %s113
    %p125 = scmp.eq.s32.totalorder %s19, 1
    %p126 = por %p124, %p125
    %p128 = scmp.ne.s32.totalorder %s113, %s127
    %p129 = scmp.eq.s32.totalorder %s19, 0
    %p130 = por %p128, %p129
    %s132 = sadd.s32 %s131, 1
    %p135 = scmp.eq.s32.totalorder %s13, 1
    %p136 = scmp.ne.s32.totalorder %s131, %s133
    %p137 = scmp.eq.s32.totalorder %s13, 0
    %p138 = por %p136, %p137
    %p139 = scmp.ne.s32.totalorder %s131, %s133
    %p140 = scmp.eq.s32.totalorder %s18, 1
    %p141 = por %p139, %p140
    %p142 = scmp.ne.s32.totalorder %s133, %s134
    %p143 = scmp.eq.s32.totalorder %s18, 0
    %p144 = por %p142, %p143
    %p145 = scmp.ne.s32.totalorder %s133, %s134
    %p146 = scmp.eq.s32.totalorder %s19, 1
    %p147 = por %p145, %p146
    %p149 = scmp.ne.s32.totalorder %s134, %s148
    %p150 = scmp.eq.s32.totalorder %s19, 0
    %p151 = por %p149, %p150
    %s153 = sadd.s32 %s152, 1
    %p156 = scmp.eq.s32.totalorder %s13, 1
    %p157 = scmp.ne.s32.totalorder %s152, %s154
    %p158 = scmp.eq.s32.totalorder %s13, 0
    %p159 = por %p157, %p158
    %p160 = scmp.ne.s32.totalorder %s152, %s154
    %p161 = scmp.eq.s32.totalorder %s18, 1
    %p162 = por %p160, %p161
    %p163 = scmp.ne.s32.totalorder %s154, %s155
    %p164 = scmp.eq.s32.totalorder %s18, 0
    %p165 = por %p163, %p164
    %p166 = scmp.ne.s32.totalorder %s154, %s155
    %p167 = scmp.eq.s32.totalorder %s19, 1
    %p168 = por %p166, %p167
    %p170 = scmp.ne.s32.totalorder %s155, %s169
    %p171 = scmp.eq.s32.totalorder %s19, 0
    %p172 = por %p170, %p171
    %s173 = ssub.s32 %s13, %s20
    %p174 = scmp.eq.s32.totalorder %s173, 0
    %s176 = sadd.s32 %s175, 1
    %s177 = scalar_select %p174, %s175, %s176
    %p180 = pneg %p174
    %p181 = scmp.eq.s32.totalorder %s13, 1
    %p182 = por %p180, %p181
    %p183 = scmp.ne.s32.totalorder %s175, %s178
    %p184 = scmp.eq.s32.totalorder %s13, 0
    %p185 = por %p183, %p184
    %p186 = scmp.ne.s32.totalorder %s175, %s178
    %p187 = scmp.eq.s32.totalorder %s18, 1
    %p188 = por %p186, %p187
    %p189 = scmp.ne.s32.totalorder %s178, %s179
    %p190 = scmp.eq.s32.totalorder %s18, 0
    %p191 = por %p189, %p190
    %p192 = scmp.ne.s32.totalorder %s178, %s179
    %p193 = scmp.eq.s32.totalorder %s19, 1
    %p194 = por %p192, %p193
    %p196 = scmp.ne.s32.totalorder %s179, %s195
    %p197 = scmp.eq.s32.totalorder %s19, 0
    %p198 = por %p196, %p197
    %p199 = scmp.le.s32.totalorder 1, %s13
    %p200 = scmp.lt.s32.totalorder %s13, 3
    %p201 = pnand %p199, %p200
    %p202 = pneg %p201
    // Predicated region
    $region9: #{tpu_custom_call.1} parent=5 // pred_check
      _
    $region10: #{tpu_custom_call.1} parent=5 // pred_check_branch
      %204 = sbr.rel (%p201) target = $region12
    $region11: #{tpu_custom_call.1} parent=5 // pred_region
      %s205 = ssub.s32 %s13, 1
      // Predicated region
      $region13: #{tpu_custom_call.1} parent=11 // pred_check
        %p206 = pneg %p60
      $region14: #{tpu_custom_call.1} parent=11 // pred_check_branch
        %208 = sbr.rel (%p206) target = $region16
      $region15: #{tpu_custom_call.1} parent=11 // pred_region
        _
      $region16: #{tpu_custom_call.1} parent=11 // pred_fallthru
        _
      // Predicated region
      $region17: #{tpu_custom_call.1} parent=11 // pred_check
        %p209 = pneg %p81
      $region18: #{tpu_custom_call.1} parent=11 // pred_check_branch
        %211 = sbr.rel (%p209) target = $region20
      $region19: #{tpu_custom_call.1} parent=11 // pred_region
        _
      $region20: #{tpu_custom_call.1} parent=11 // pred_fallthru
        _
      // Predicated region
      $region21: #{tpu_custom_call.1} parent=11 // pred_check
        %p212 = pneg %p102
      $region22: #{tpu_custom_call.1} parent=11 // pred_check_branch
        %214 = sbr.rel (%p212) target = $region24
      $region23: #{tpu_custom_call.1} parent=11 // pred_region
        _
      $region24: #{tpu_custom_call.1} parent=11 // pred_fallthru
        _
      // Predicated region
      $region25: #{tpu_custom_call.1} parent=11 // pred_check
        %p215 = pneg %p123
      $region26: #{tpu_custom_call.1} parent=11 // pred_check_branch
        %217 = sbr.rel (%p215) target = $region28
      $region27: #{tpu_custom_call.1} parent=11 // pred_region
        _
      $region28: #{tpu_custom_call.1} parent=11 // pred_fallthru
        _
      // Predicated region
      $region29: #{tpu_custom_call.1} parent=11 // pred_check
        %p218 = pneg %p144
      $region30: #{tpu_custom_call.1} parent=11 // pred_check_branch
        %220 = sbr.rel (%p218) target = $region32
      $region31: #{tpu_custom_call.1} parent=11 // pred_region
        _
      $region32: #{tpu_custom_call.1} parent=11 // pred_fallthru
        _
      // Predicated region
      $region33: #{tpu_custom_call.1} parent=11 // pred_check
        %p221 = pneg %p165
      $region34: #{tpu_custom_call.1} parent=11 // pred_check_branch
        %223 = sbr.rel (%p221) target = $region36
      $region35: #{tpu_custom_call.1} parent=11 // pred_region
        _
      $region36: #{tpu_custom_call.1} parent=11 // pred_fallthru
        _
    $region12: #{tpu_custom_call.1} parent=5 // pred_fallthru
      _
    %p224 = scmp.lt.s32.totalorder %s13, 2
    // Predicated region
    $region37: #{tpu_custom_call.1} parent=5 // pred_check
      %p225 = pneg %p224
    $region38: #{tpu_custom_call.1} parent=5 // pred_check_branch
      %227 = sbr.rel (%p225) target = $region40
    $region39: #{tpu_custom_call.1} parent=5 // pred_region
      // Predicated region
      $region41: #{tpu_custom_call.1} parent=39 // pred_check
        %p228 = pneg %p33
      $region42: #{tpu_custom_call.1} parent=39 // pred_check_branch
        %230 = sbr.rel (%p228) target = $region44
      $region43: #{tpu_custom_call.1} parent=39 // pred_region
        %p231 = scmp.lt.s32.totalorder %s13, 1
        %s232 = scalar_select %p231, %s13, 1
        %s233 = smul.addr %s232, 18
        %s234 = smul.addr %s233, 4
        %s235 = scalar_lea.vmem %s0, %s234
      $region44: #{tpu_custom_call.1} parent=39 // pred_fallthru
        _
    $region40: #{tpu_custom_call.1} parent=5 // pred_fallthru
      _
    %p236 = scmp.le.s32.totalorder 1, %s13
    %p237 = scmp.lt.s32.totalorder %s13, 3
    %p238 = pnand %p236, %p237
    %p239 = pneg %p238
    // Predicated region
    $region45: #{tpu_custom_call.1} parent=5 // pred_check
      _
    $region46: #{tpu_custom_call.1} parent=5 // pred_check_branch
      %241 = sbr.rel (%p238) target = $region48
    $region47: #{tpu_custom_call.1} parent=5 // pred_region
      %s242 = ssub.s32 %s13, 1
      %p243 = scmp.lt.s32.totalorder %s18, 1
      %s244 = scalar_select %p243, %s18, 1
      %s245 = smul.addr %s244, 18
      %s246 = smul.addr %s245, 4
      %s247 = scalar_lea.vmem %s0, %s246
      %p248 = pneg %p39
      %p249 = pneg %p36
      %p250 = pneg %p60
      %p251 = pneg %p57
      %p252 = pneg %p81
      %p253 = pneg %p78
      %p254 = pneg %p102
      %p255 = pneg %p99
      %p256 = pneg %p123
      %p257 = pneg %p120
      %p258 = pneg %p144
      %p259 = pneg %p141
      %p260 = pneg %p165
      %p261 = pneg %p162
      %p262 = pneg %p191
      %p263 = pneg %p188
      %p264 = scmp.lt.s32.totalorder %s18, 1
      %s265 = scalar_select %p264, %s18, 1
      %s266 = smul.addr %s265, 18
      %s267 = smul.addr %s266, 4
      %s268 = scalar_lea.vmem %s7, %s267
      %p269 = scmp.lt.s32.totalorder %s18, 1
      %s270 = scalar_select %p269, %s18, 1
      %s271 = smul.addr %s270, 18
      %s272 = smul.addr %s271, 4
      %s273 = scalar_lea.vmem %s0, %s272
      %p274 = scmp.lt.s32.totalorder %s18, 1
      %s275 = scalar_select %p274, %s18, 1
      %s276 = smul.addr %s275, 18
      %s277 = smul.addr %s276, 4
      %s278 = scalar_lea.vmem %s7, %s277
      %v280 = vld [vmem:[%s273] sm:$0xf]
      %v281 = vld [vmem:[%s273 + $0x4] sm:$0xf]
      %v282 = vld [vmem:[%s273 + $0x8] sm:$0xf]
      %v283 = vld [vmem:[%s273 + $0xc] sm:$0xf]
      %v284 = vld [vmem:[%s273 + $0x10] sm:$0xf]
      %v285 = vld [vmem:[%s273 + $0x14] sm:$0xf]
      %v286 = vld [vmem:[%s273 + $0x18] sm:$0xf]
      %v287 = vld [vmem:[%s273 + $0x1c] sm:$0xf]
      %v288 = vld [vmem:[%s273 + $0x20] sm:$0xf]
      %v289 = vld [vmem:[%s273 + $0x24] sm:$0xf]
      %v290 = vld [vmem:[%s273 + $0x28] sm:$0xf]
      %v291 = vld [vmem:[%s273 + $0x2c] sm:$0xf]
      %v292 = vld [vmem:[%s273 + $0x30] sm:$0xf]
      %v293 = vld [vmem:[%s273 + $0x34] sm:$0xf]
      %v294 = vld [vmem:[%s273 + $0x38] sm:$0xf]
      %v295 = vld [vmem:[%s273 + $0x3c] sm:$0xf]
      %v296 = vld [vmem:[%s273 + $0x40] sm:$0xf]
      %v297 = vld [vmem:[%s273 + $0x44] sm:$0xf]
      %v298 = vld [vmem:[%s1] sm:$0xff]
      %v299 = vld [vmem:[%s1 + $0x8] sm:$0xff]
      %v300 = vld [vmem:[%s1 + $0x10] sm:$0xff]
      %v301 = vld [vmem:[%s1 + $0x18] sm:$0xff]
      %v302 = vld [vmem:[%s1 + $0x20] sm:$0xff]
      %v303 = vld [vmem:[%s1 + $0x28] sm:$0xff]
      %v304 = vld [vmem:[%s1 + $0x30] sm:$0x11]
      %v312 = vunpack.c.l.b16 %v298
      %v313 = vunpack.c.h.b16 %v298
      %v314 = vunpack.c.l.b16 %v299
      %v315 = vunpack.c.h.b16 %v299
      %v316 = vunpack.c.l.b16 %v300
      %v317 = vunpack.c.h.b16 %v300
      %v318 = vunpack.c.l.b16 %v301
      %v319 = vunpack.c.h.b16 %v301
      %v320 = vunpack.c.l.b16 %v302
      %v321 = vunpack.c.h.b16 %v302
      %v322 = vunpack.c.l.b16 %v303
      %v323 = vunpack.c.h.b16 %v303
      %v324 = vunpack.c.l.b16 %v304
      %v325 = vunpack.c.h.b16 %v304
      %v326 = vpack.c.b16 %v314, %v312
      %v327 = vpack.c.b16 %v315, %v313
      %v328 = vpack.c.b16 %v318, %v316
      %v329 = vpack.c.b16 %v319, %v317
      %v330 = vpack.c.b16 %v322, %v320
      %v331 = vpack.c.b16 %v323, %v321
      %v332 = vpack.c.b16 %v324, %v324
      %v333 = vpack.c.b16 %v325, %v325
      %v356 = vunpack.c.l.b16 %v280
      %v357 = vunpack.c.l.b16 %v281
      %v358 = vunpack.c.l.b16 %v282
      %v359 = vunpack.c.l.b16 %v283
      %v360 = vunpack.c.l.b16 %v284
      %v361 = vunpack.c.l.b16 %v285
      %v362 = vunpack.c.l.b16 %v286
      %v363 = vunpack.c.l.b16 %v287
      %v364 = vunpack.c.l.b16 %v288
      %v365 = vunpack.c.l.b16 %v289
      %v366 = vunpack.c.l.b16 %v290
      %v367 = vunpack.c.l.b16 %v291
      %v368 = vunpack.c.l.b16 %v292
      %v369 = vunpack.c.l.b16 %v293
      %v370 = vunpack.c.l.b16 %v294
      %v371 = vunpack.c.l.b16 %v295
      %v372 = vunpack.c.l.b16 %v296
      %v373 = vunpack.c.l.b16 %v297
      %v374 = vpack.c.b16 %v357, %v356
      %v375 = vpack.c.b16 %v359, %v358
      %v376 = vpack.c.b16 %v361, %v360
      %v377 = vpack.c.b16 %v363, %v362
      %v378 = vpack.c.b16 %v365, %v364
      %v379 = vpack.c.b16 %v367, %v366
      %v380 = vpack.c.b16 %v369, %v368
      %v381 = vpack.c.b16 %v371, %v370
      %v382 = vpack.c.b16 %v373, %v372
      %vm392 = vcmask 130048
      %v394 = vsel %vm392, %v327, 0
      %v397 = vsel %vm392, %v329, 0
      %v400 = vsel %vm392, %v331, 0
      %v403 = vsel %vm392, %v333, 0
      %405 = vmatprep.subr.bf16.mxu0 0
      %406 = vmatpush1.bf16.msra.mxu0 %v381
      %407 = vmatprep.subr.bf16.mxu0 0
      %408 = vmatpush1.bf16.msra.mxu0 %v380
      %409 = vmatprep.subr.bf16.mxu0 0
      %410 = vmatpush1.bf16.msra.mxu0 %v379
      %411 = vmatprep.subr.bf16.mxu0 0
      %412 = vmatpush1.bf16.msra.mxu0 %v378
      %413 = vmatprep.subr.bf16.mxu0 0
      %414 = vmatpush1.bf16.msra.mxu0 %v377
      %415 = vmatprep.subr.bf16.mxu0 0
      %416 = vmatpush1.bf16.msra.mxu0 %v376
      %417 = vmatprep.subr.bf16.mxu0 0
      %418 = vmatpush1.bf16.msra.mxu0 %v375
      %419 = vmatprep.subr.bf16.mxu0 0
      %420 = vmatpush1.bf16.msra.mxu0 %v374
      %421 = vmatprep.subr.bf16.mxu0 0
      %422 = vmatpush2.bf16.msra.mxu0 0
      %423 = vmatprep.subr.bf16.mxu0 0
      %424 = vmatpush2.bf16.msra.mxu0 0
      %425 = vmatprep.subr.bf16.mxu0 0
      %426 = vmatpush2.bf16.msra.mxu0 0
      %427 = vmatprep.subr.bf16.mxu0 0
      %428 = vmatpush2.bf16.msra.mxu0 0
      %429 = vmatprep.subr.bf16.mxu0 0
      %430 = vmatpush2.bf16.msra.mxu0 0
      %431 = vmatprep.subr.bf16.mxu0 0
      %432 = vmatpush2.bf16.msra.mxu0 0
      %433 = vmatprep.subr.bf16.mxu0 0
      %434 = vmatpush2.bf16.msra.mxu0 0
      %435 = vmatprep.subr.bf16.mxu0 0
      %436 = vmatpush2.bf16.msra.mxu0 %v382
      %437 = vmatprep.mubr.bf16.mxu0 %v394
      %438 = vmatmul.mubr.bf16.gmra.mxu0 %v326
      %v439 = vpop.f32.mrf.mxu0
      %v440 = vadd.f32 0.0, %v439
      %v441 = vpop.f32.mrf.mxu0
      %v442 = vpop.f32.mrf.mxu0
      %v443 = vadd.f32 0.0, %v442
      %v444 = vpop.f32.mrf.mxu0
      %445 = vmatprep.mubr.bf16.mxu0 %v397
      %446 = vmatmul.mubr.bf16.gmra.mxu0 %v328
      %v447 = vpop.f32.mrf.mxu0
      %v448 = vadd.f32 0.0, %v447
      %v449 = vpop.f32.mrf.mxu0
      %v450 = vpop.f32.mrf.mxu0
      %v451 = vadd.f32 0.0, %v450
      %v452 = vpop.f32.mrf.mxu0
      %453 = vmatprep.mubr.bf16.mxu0 %v400
      %454 = vmatmul.mubr.bf16.gmra.mxu0 %v330
      %v455 = vpop.f32.mrf.mxu0
      %v456 = vadd.f32 0.0, %v455
      %v457 = vpop.f32.mrf.mxu0
      %v458 = vpop.f32.mrf.mxu0
      %v459 = vadd.f32 0.0, %v458
      %v460 = vpop.f32.mrf.mxu0
      %461 = vmatprep.mubr.bf16.mxu0 %v403
      %462 = vmatmul.mubr.bf16.gmra.mxu0 %v332
      %v463 = vpop.f32.mrf.mxu0
      %v464 = vadd.f32 0.0, %v463
      %v465 = vpop.f32.mrf.mxu0
      %v466 = vpop.f32.mrf.mxu0
      %v467 = vpop.f32.mrf.mxu0
      %468 = vdwg.mxu0
      %v469 = vpack.c.bf16 %v443, %v440
      %v470 = vpack.c.bf16 %v451, %v448
      %v471 = vpack.c.bf16 %v459, %v456
      %v472 = vpack.c.bf16 %v464, %v464
      %v473 = vld [vmem:[%s2] sm:$0xf]
      %vm474 = vcmask 64512
      %v476 = vsel %vm474, %v469, 0
      %v479 = vsel %vm474, %v470, 0
      %v482 = vsel %vm474, %v471, 0
      %v485 = vsel %vm474, %v472, 0
      %vm487 = vcmask 1043456
      %v489 = vsel %vm487, %v473, 0
      %491 = vmatprep.subr.bf16.mxu0 0
      %492 = vmatpush1.bf16.msra.mxu0 0
      %493 = vmatprep.subr.bf16.mxu0 0
      %494 = vmatpush1.bf16.msra.mxu0 0
      %495 = vmatprep.subr.bf16.mxu0 0
      %496 = vmatpush1.bf16.msra.mxu0 0
      %497 = vmatprep.subr.bf16.mxu0 0
      %498 = vmatpush1.bf16.msra.mxu0 0
      %499 = vmatprep.subr.bf16.mxu0 0
      %500 = vmatpush1.bf16.msra.mxu0 0
      %501 = vmatprep.subr.bf16.mxu0 0
      %502 = vmatpush1.bf16.msra.mxu0 0
      %503 = vmatprep.subr.bf16.mxu0 0
      %504 = vmatpush1.bf16.msra.mxu0 0
      %505 = vmatprep.subr.bf16.mxu0 0
      %506 = vmatpush1.bf16.msra.mxu0 %v489
      %507 = vmatprep.subr.bf16.mxu0 0
      %508 = vmatpush2.bf16.msra.mxu0 0
      %509 = vmatprep.subr.bf16.mxu0 0
      %510 = vmatpush2.bf16.msra.mxu0 0
      %511 = vmatprep.subr.bf16.mxu0 0
      %512 = vmatpush2.bf16.msra.mxu0 0
      %513 = vmatprep.subr.bf16.mxu0 0
      %514 = vmatpush2.bf16.msra.mxu0 0
      %515 = vmatprep.subr.bf16.mxu0 0
      %516 = vmatpush2.bf16.msra.mxu0 0
      %517 = vmatprep.subr.bf16.mxu0 0
      %518 = vmatpush2.bf16.msra.mxu0 0
      %519 = vmatprep.subr.bf16.mxu0 0
      %520 = vmatpush2.bf16.msra.mxu0 0
      %521 = vmatprep.subr.bf16.mxu0 0
      %522 = vmatpush2.bf16.msra.mxu0 0
      %523 = vmatprep.mubr.bf16.mxu0 0
      %524 = vmatmul.mubr.bf16.gmra.mxu0 %v476
      %v525 = vpop.f32.mrf.mxu0
      %v526 = vadd.f32 0.0, %v525
      %v527 = vpop.f32.mrf.mxu0
      %v528 = vpop.f32.mrf.mxu0
      %v529 = vadd.f32 0.0, %v528
      %v530 = vpop.f32.mrf.mxu0
      %531 = vmatprep.mubr.bf16.mxu0 0
      %532 = vmatmul.mubr.bf16.gmra.mxu0 %v479
      %v533 = vpop.f32.mrf.mxu0
      %v534 = vadd.f32 0.0, %v533
      %v535 = vpop.f32.mrf.mxu0
      %v536 = vpop.f32.mrf.mxu0
      %v537 = vadd.f32 0.0, %v536
      %v538 = vpop.f32.mrf.mxu0
      %539 = vmatprep.mubr.bf16.mxu0 0
      %540 = vmatmul.mubr.bf16.gmra.mxu0 %v482
      %v541 = vpop.f32.mrf.mxu0
      %v542 = vadd.f32 0.0, %v541
      %v543 = vpop.f32.mrf.mxu0
      %v544 = vpop.f32.mrf.mxu0
      %v545 = vadd.f32 0.0, %v544
      %v546 = vpop.f32.mrf.mxu0
      %547 = vmatprep.mubr.bf16.mxu0 0
      %548 = vmatmul.mubr.bf16.gmra.mxu0 %v485
      %v549 = vpop.f32.mrf.mxu0
      %v550 = vadd.f32 0.0, %v549
      %v551 = vpop.f32.mrf.mxu0
      %v552 = vpop.f32.mrf.mxu0
      %v553 = vpop.f32.mrf.mxu0
      %554 = vdwg.mxu0
      %v555 = vld [vmem:[%s3] sm:$0x1]
      %v557 = vlaneseq
      %v558 = vshrl.u32 %v557, 7
      %v559 = vsub.s32 0, %v558
      %v560 = vrot.slane %v555, %v559
      %v562 = vmul.f32 %v526, %v560
      %v563 = vmul.f32 %v529, %v560
      %v564 = vmul.f32 %v534, %v560
      %v565 = vmul.f32 %v537, %v560
      %v566 = vmul.f32 %v542, %v560
      %v567 = vmul.f32 %v545, %v560
      %v568 = vmul.f32 %v550, %v560
      %v569 = vld [vmem:[%s4] sm:$0x1]
      %v571 = vlaneseq
      %v572 = vshrl.u32 %v571, 7
      %v573 = vsub.s32 0, %v572
      %v574 = vrot.slane %v569, %v573
      %v576 = vadd.f32 %v562, %v574
      %v577 = vadd.f32 %v563, %v574
      %v578 = vadd.f32 %v564, %v574
      %v579 = vadd.f32 %v565, %v574
      %v580 = vadd.f32 %v566, %v574
      %v581 = vadd.f32 %v567, %v574
      %v582 = vadd.f32 %v568, %v574
      %v583 = vmax.f32 %v576, 0.0
      %v584 = vmax.f32 %v577, 0.0
      %v585 = vmax.f32 %v578, 0.0
      %v586 = vmax.f32 %v579, 0.0
      %v587 = vmax.f32 %v580, 0.0
      %v588 = vmax.f32 %v581, 0.0
      %v589 = vmax.f32 %v582, 0.0
      %v590 = vld [vmem:[%s5] sm:$0xff]
      %v591 = vld [vmem:[%s5 + $0x8] sm:$0xff]
      %v592 = vld [vmem:[%s5 + $0x10] sm:$0xff]
      %v593 = vld [vmem:[%s5 + $0x18] sm:$0xff]
      %v594 = vld [vmem:[%s5 + $0x20] sm:$0xff]
      %v595 = vld [vmem:[%s5 + $0x28] sm:$0xff]
      %v596 = vld [vmem:[%s5 + $0x30] sm:$0x3]
      %v597 = vmul.f32 %v583, %v590
      %v598 = vmul.f32 %v584, %v591
      %v599 = vmul.f32 %v585, %v592
      %v600 = vmul.f32 %v586, %v593
      %v601 = vmul.f32 %v587, %v594
      %v602 = vmul.f32 %v588, %v595
      %v603 = vmul.f32 %v589, %v596
      %v604 = vld [vmem:[%s6] sm:$0xf]
      %v605 = vld [vmem:[%s6 + $0x4] sm:$0xf]
      %v606 = vld [vmem:[%s6 + $0x8] sm:$0xf]
      %v607 = vld [vmem:[%s6 + $0xc] sm:$0xf]
      %v608 = vld [vmem:[%s6 + $0x10] sm:$0xf]
      %v609 = vld [vmem:[%s6 + $0x14] sm:$0xf]
      %v610 = vld [vmem:[%s6 + $0x18] sm:$0xf]
      %v611 = vld [vmem:[%s6 + $0x1c] sm:$0xf]
      %v612 = vld [vmem:[%s6 + $0x20] sm:$0xf]
      %v613 = vld [vmem:[%s6 + $0x24] sm:$0xf]
      %v614 = vld [vmem:[%s6 + $0x28] sm:$0xf]
      %v615 = vld [vmem:[%s6 + $0x2c] sm:$0xf]
      %v616 = vld [vmem:[%s6 + $0x30] sm:$0xf]
      %v617 = vld [vmem:[%s6 + $0x34] sm:$0xf]
      %v618 = vld [vmem:[%s6 + $0x38] sm:$0xf]
      %v619 = vld [vmem:[%s6 + $0x3c] sm:$0xf]
      %v620 = vld [vmem:[%s6 + $0x40] sm:$0xf]
      %v621 = vld [vmem:[%s6 + $0x44] sm:$0xf]
      %v622 = vpack.c.bf16 %v598, %v597
      %v623 = vpack.c.bf16 %v600, %v599
      %v624 = vpack.c.bf16 %v602, %v601
      %v625 = vpack.c.bf16 %v603, %v603
      %v644 = vunpack.c.l.b16 %v604
      %v645 = vunpack.c.l.b16 %v605
      %v646 = vunpack.c.l.b16 %v606
      %v647 = vunpack.c.l.b16 %v607
      %v648 = vunpack.c.l.b16 %v608
      %v649 = vunpack.c.l.b16 %v609
      %v650 = vunpack.c.l.b16 %v610
      %v651 = vunpack.c.l.b16 %v611
      %v652 = vunpack.c.l.b16 %v612
      %v653 = vunpack.c.l.b16 %v613
      %v654 = vunpack.c.l.b16 %v614
      %v655 = vunpack.c.l.b16 %v615
      %v656 = vunpack.c.l.b16 %v616
      %v657 = vunpack.c.l.b16 %v617
      %v658 = vunpack.c.l.b16 %v618
      %v659 = vunpack.c.l.b16 %v619
      %v660 = vunpack.c.l.b16 %v620
      %v661 = vunpack.c.l.b16 %v621
      %v662 = vpack.c.b16 %v645, %v644
      %v663 = vpack.c.b16 %v647, %v646
      %v664 = vpack.c.b16 %v649, %v648
      %v665 = vpack.c.b16 %v651, %v650
      %v666 = vpack.c.b16 %v653, %v652
      %v667 = vpack.c.b16 %v655, %v654
      %v668 = vpack.c.b16 %v657, %v656
      %v669 = vpack.c.b16 %v659, %v658
      %v670 = vpack.c.b16 %v661, %v660
      %vm671 = vcmask 408576
      %v673 = vsel %vm671, %v662, 0
      %v676 = vsel %vm671, %v663, 0
      %v679 = vsel %vm671, %v664, 0
      %v682 = vsel %vm671, %v665, 0
      %v685 = vsel %vm671, %v666, 0
      %v688 = vsel %vm671, %v667, 0
      %v691 = vsel %vm671, %v668, 0
      %v694 = vsel %vm671, %v669, 0
      %v697 = vsel %vm671, %v670, 0
      %vm699 = vcmask 1040384
      %v701 = vsel %vm699, %v625, 0
      %703 = vmatprep.subr.bf16.mxu0 0
      %704 = vmatpush1.bf16.msra.mxu0 0
      %705 = vmatprep.subr.bf16.mxu0 0
      %706 = vmatpush1.bf16.msra.mxu0 0
      %707 = vmatprep.subr.bf16.mxu0 0
      %708 = vmatpush1.bf16.msra.mxu0 0
      %709 = vmatprep.subr.bf16.mxu0 0
      %710 = vmatpush1.bf16.msra.mxu0 0
      %711 = vmatprep.subr.bf16.mxu0 0
      %712 = vmatpush1.bf16.msra.mxu0 %v701
      %713 = vmatprep.subr.bf16.mxu0 0
      %714 = vmatpush1.bf16.msra.mxu0 %v624
      %715 = vmatprep.subr.bf16.mxu0 0
      %716 = vmatpush1.bf16.msra.mxu0 %v623
      %717 = vmatprep.subr.bf16.mxu0 0
      %718 = vmatpush1.bf16.msra.mxu0 %v622
      %719 = vmatprep.subr.bf16.mxu0 0
      %720 = vmatpush2.bf16.msra.mxu0 0
      %721 = vmatprep.subr.bf16.mxu0 0
      %722 = vmatpush2.bf16.msra.mxu0 0
      %723 = vmatprep.subr.bf16.mxu0 0
      %724 = vmatpush2.bf16.msra.mxu0 0
      %725 = vmatprep.subr.bf16.mxu0 0
      %726 = vmatpush2.bf16.msra.mxu0 0
      %727 = vmatprep.subr.bf16.mxu0 0
      %728 = vmatpush2.bf16.msra.mxu0 0
      %729 = vmatprep.subr.bf16.mxu0 0
      %730 = vmatpush2.bf16.msra.mxu0 0
      %731 = vmatprep.subr.bf16.mxu0 0
      %732 = vmatpush2.bf16.msra.mxu0 0
      %733 = vmatprep.subr.bf16.mxu0 0
      %734 = vmatpush2.bf16.msra.mxu0 0
      %735 = vmatprep.mubr.bf16.mxu0 0
      %736 = vmatmul.mubr.bf16.gmra.mxu0 %v673
      %v737 = vpop.f32.mrf.mxu0
      %v738 = vadd.f32 0.0, %v737
      %v739 = vpop.f32.mrf.mxu0
      %v740 = vpop.f32.mrf.mxu0
      %v741 = vadd.f32 0.0, %v740
      %v742 = vpop.f32.mrf.mxu0
      %743 = vmatprep.mubr.bf16.mxu0 0
      %744 = vmatmul.mubr.bf16.gmra.mxu0 %v676
      %v745 = vpop.f32.mrf.mxu0
      %v746 = vadd.f32 0.0, %v745
      %v747 = vpop.f32.mrf.mxu0
      %v748 = vpop.f32.mrf.mxu0
      %v749 = vadd.f32 0.0, %v748
      %v750 = vpop.f32.mrf.mxu0
      %751 = vmatprep.mubr.bf16.mxu0 0
      %752 = vmatmul.mubr.bf16.gmra.mxu0 %v679
      %v753 = vpop.f32.mrf.mxu0
      %v754 = vadd.f32 0.0, %v753
      %v755 = vpop.f32.mrf.mxu0
      %v756 = vpop.f32.mrf.mxu0
      %v757 = vadd.f32 0.0, %v756
      %v758 = vpop.f32.mrf.mxu0
      %759 = vmatprep.mubr.bf16.mxu0 0
      %760 = vmatmul.mubr.bf16.gmra.mxu0 %v682
      %v761 = vpop.f32.mrf.mxu0
      %v762 = vadd.f32 0.0, %v761
      %v763 = vpop.f32.mrf.mxu0
      %v764 = vpop.f32.mrf.mxu0
      %v765 = vadd.f32 0.0, %v764
      %v766 = vpop.f32.mrf.mxu0
      %767 = vmatprep.mubr.bf16.mxu0 0
      %768 = vmatmul.mubr.bf16.gmra.mxu0 %v685
      %v769 = vpop.f32.mrf.mxu0
      %v770 = vadd.f32 0.0, %v769
      %v771 = vpop.f32.mrf.mxu0
      %v772 = vpop.f32.mrf.mxu0
      %v773 = vadd.f32 0.0, %v772
      %v774 = vpop.f32.mrf.mxu0
      %775 = vmatprep.mubr.bf16.mxu0 0
      %776 = vmatmul.mubr.bf16.gmra.mxu0 %v688
      %v777 = vpop.f32.mrf.mxu0
      %v778 = vadd.f32 0.0, %v777
      %v779 = vpop.f32.mrf.mxu0
      %v780 = vpop.f32.mrf.mxu0
      %v781 = vadd.f32 0.0, %v780
      %v782 = vpop.f32.mrf.mxu0
      %783 = vmatprep.mubr.bf16.mxu0 0
      %784 = vmatmul.mubr.bf16.gmra.mxu0 %v691
      %v785 = vpop.f32.mrf.mxu0
      %v786 = vadd.f32 0.0, %v785
      %v787 = vpop.f32.mrf.mxu0
      %v788 = vpop.f32.mrf.mxu0
      %v789 = vadd.f32 0.0, %v788
      %v790 = vpop.f32.mrf.mxu0
      %791 = vmatprep.mubr.bf16.mxu0 0
      %792 = vmatmul.mubr.bf16.gmra.mxu0 %v694
      %v793 = vpop.f32.mrf.mxu0
      %v794 = vadd.f32 0.0, %v793
      %v795 = vpop.f32.mrf.mxu0
      %v796 = vpop.f32.mrf.mxu0
      %v797 = vadd.f32 0.0, %v796
      %v798 = vpop.f32.mrf.mxu0
      %799 = vmatprep.mubr.bf16.mxu0 0
      %800 = vmatmul.mubr.bf16.gmra.mxu0 %v697
      %v801 = vpop.f32.mrf.mxu0
      %v802 = vadd.f32 0.0, %v801
      %v803 = vpop.f32.mrf.mxu0
      %v804 = vpop.f32.mrf.mxu0
      %v805 = vadd.f32 0.0, %v804
      %v806 = vpop.f32.mrf.mxu0
      %807 = vdwg.mxu0
      %v808 = vpack.c.bf16 %v741, %v738
      %v809 = vpack.c.bf16 %v749, %v746
      %v810 = vpack.c.bf16 %v757, %v754
      %v811 = vpack.c.bf16 %v765, %v762
      %v812 = vpack.c.bf16 %v773, %v770
      %v813 = vpack.c.bf16 %v781, %v778
      %v814 = vpack.c.bf16 %v789, %v786
      %v815 = vpack.c.bf16 %v797, %v794
      %v816 = vpack.c.bf16 %v805, %v802
      %v826 = vunpack.c.l.b16 %v808
      %v827 = vunpack.c.h.b16 %v808
      %v828 = vunpack.c.l.b16 %v809
      %v829 = vunpack.c.h.b16 %v809
      %v830 = vunpack.c.l.b16 %v810
      %v831 = vunpack.c.h.b16 %v810
      %v832 = vunpack.c.l.b16 %v811
      %v833 = vunpack.c.h.b16 %v811
      %v834 = vunpack.c.l.b16 %v812
      %v835 = vunpack.c.h.b16 %v812
      %v836 = vunpack.c.l.b16 %v813
      %v837 = vunpack.c.h.b16 %v813
      %v838 = vunpack.c.l.b16 %v814
      %v839 = vunpack.c.h.b16 %v814
      %v840 = vunpack.c.l.b16 %v815
      %v841 = vunpack.c.h.b16 %v815
      %v842 = vunpack.c.l.b16 %v816
      %v843 = vunpack.c.h.b16 %v816
      %v844 = vpack.c.b16 %v826, %v826
      %v845 = vpack.c.b16 %v827, %v827
      %v846 = vpack.c.b16 %v828, %v828
      %v847 = vpack.c.b16 %v829, %v829
      %v848 = vpack.c.b16 %v830, %v830
      %v849 = vpack.c.b16 %v831, %v831
      %v850 = vpack.c.b16 %v832, %v832
      %v851 = vpack.c.b16 %v833, %v833
      %v852 = vpack.c.b16 %v834, %v834
      %v853 = vpack.c.b16 %v835, %v835
      %v854 = vpack.c.b16 %v836, %v836
      %v855 = vpack.c.b16 %v837, %v837
      %v856 = vpack.c.b16 %v838, %v838
      %v857 = vpack.c.b16 %v839, %v839
      %v858 = vpack.c.b16 %v840, %v840
      %v859 = vpack.c.b16 %v841, %v841
      %v860 = vpack.c.b16 %v842, %v842
      %v861 = vpack.c.b16 %v843, %v843
      %vm880 = vcmask 60416
      %881 = vst.msk [vmem:[%s278] sm:$0xf] %vm880, %v844
      %882 = vst.msk [vmem:[%s278 + $0x4] sm:$0xf] %vm880, %v845
      %883 = vst.msk [vmem:[%s278 + $0x8] sm:$0xf] %vm880, %v846
      %884 = vst.msk [vmem:[%s278 + $0xc] sm:$0xf] %vm880, %v847
      %885 = vst.msk [vmem:[%s278 + $0x10] sm:$0xf] %vm880, %v848
      %886 = vst.msk [vmem:[%s278 + $0x14] sm:$0xf] %vm880, %v849
      %887 = vst.msk [vmem:[%s278 + $0x18] sm:$0xf] %vm880, %v850
      %888 = vst.msk [vmem:[%s278 + $0x1c] sm:$0xf] %vm880, %v851
      %889 = vst.msk [vmem:[%s278 + $0x20] sm:$0xf] %vm880, %v852
      %890 = vst.msk [vmem:[%s278 + $0x24] sm:$0xf] %vm880, %v853
      %891 = vst.msk [vmem:[%s278 + $0x28] sm:$0xf] %vm880, %v854
      %892 = vst.msk [vmem:[%s278 + $0x2c] sm:$0xf] %vm880, %v855
      %893 = vst.msk [vmem:[%s278 + $0x30] sm:$0xf] %vm880, %v856
      %894 = vst.msk [vmem:[%s278 + $0x34] sm:$0xf] %vm880, %v857
      %895 = vst.msk [vmem:[%s278 + $0x38] sm:$0xf] %vm880, %v858
      %896 = vst.msk [vmem:[%s278 + $0x3c] sm:$0xf] %vm880, %v859
      %897 = vst.msk [vmem:[%s278 + $0x40] sm:$0xf] %vm880, %v860
      %898 = vst.msk [vmem:[%s278 + $0x44] sm:$0xf] %vm880, %v861
      %p899 = scmp.lt.s32.totalorder %s18, 1
      %s900 = scalar_select %p899, %s18, 1
      %s901 = smul.addr %s900, 18
      %s902 = smul.addr %s901, 4
      %s903 = scalar_lea.vmem %s7, %s902
      // Predicated region
      $region49: #{tpu_custom_call.1} parent=47 // pred_check
        %p904 = pneg %p188
      $region50: #{tpu_custom_call.1} parent=47 // pred_check_branch
        %906 = sbr.rel (%p904) target = $region52
      $region51: #{tpu_custom_call.1} parent=47 // pred_region
        _
      $region52: #{tpu_custom_call.1} parent=47 // pred_fallthru
        _
    $region48: #{tpu_custom_call.1} parent=5 // pred_fallthru
      _
    %p907 = scmp.le.s32.totalorder 2, %s13
    // Predicated region
    $region53: #{tpu_custom_call.1} parent=5 // pred_check
      %p908 = pneg %p907
    $region54: #{tpu_custom_call.1} parent=5 // pred_check_branch
      %910 = sbr.rel (%p908) target = $region56
    $region55: #{tpu_custom_call.1} parent=5 // pred_region
      %s911 = ssub.s32 %s13, 2
      // Predicated region
      $region57: #{tpu_custom_call.1} parent=55 // pred_check
        %p912 = pneg %p194
      $region58: #{tpu_custom_call.1} parent=55 // pred_check_branch
        %914 = sbr.rel (%p912) target = $region60
      $region59: #{tpu_custom_call.1} parent=55 // pred_region
        %p915 = scmp.lt.s32.totalorder %s19, 1
        %s916 = scalar_select %p915, %s19, 1
        %s917 = smul.addr %s916, 18
        %s918 = smul.addr %s917, 4
        %s919 = scalar_lea.vmem %s7, %s918
      $region60: #{tpu_custom_call.1} parent=55 // pred_fallthru
        _
    $region56: #{tpu_custom_call.1} parent=5 // pred_fallthru
      _
  $region6: #{tpu_custom_call.1} parent=0 // loop_footer
    %s17 = sadd.s32 1, %s13
  $region7: #{tpu_custom_call.1} parent=0 // loop_footer_branch
    %12 = sbr.rel target = $region3
  $region8: #{tpu_custom_call.1} parent=0 // loop_exit
    _

</llo_original>
